<compile_context>
chip_gen: v7x
topology: tpu7x:2x2x1
jax: 0.10.0
libtpu: 0.0.40
codegen_flags: <defaults>
</compile_context>

<pallas_src>
import functools

import jax
import jax.numpy as jnp
from jax import lax
from jax.experimental import pallas as pl
from jax.experimental.pallas import tpu as pltpu


def img_input_kernel(body_ref, halo_ref, w_ref, b_ref, o_ref, *, W):
    """One (batch, row-tile) step of conv3x3(pad=1) + folded-BN + ReLU.

    body_ref: (1, Cin, tn)   bf16  row-padded, lane-flattened input tile
    halo_ref: (1, Cin, hsz)  bf16  the next hsz lanes (bottom halo rows)
    w_ref:    (9, Cout, Cin) bf16  conv weights * BN scale, tap-major
    b_ref:    (Cout, 1)      f32   folded bias: (conv_b - mean)*scale + beta
    o_ref:    (1, Cout, tn)  f32   lane-dense output tile (flat index y*W + x)
    """
    Lout = o_ref.shape[2]

    # Haloed slab.  Tap (dy, dx) of output lane p = y*W + x reads slab lane
    # p + dy*W + dx (guaranteed in range by the wrapper's flat layout: the
    # flattened input has a 1-element front offset and a zero top-pad row).
    slab = jnp.concatenate([body_ref[0], halo_ref[0]], axis=-1)   # (Cin, tn+hsz)

    # Column (x) index of every output lane, for left/right zero-pad masking.
    col = lax.broadcasted_iota(jnp.int32, (1, Lout), 1) % W

    out = None
    for dx in range(3):
        part = None
        for dy in range(3):
            s = dy * W + dx
            tap = slab[:, s:s + Lout]                              # (Cin, Lout)
            d = jnp.dot(w_ref[dy * 3 + dx], tap,
                        preferred_element_type=jnp.float32)        # (Cout, Lout)
            part = d if part is None else part + d
        if dx == 0:      # reads column x-1: zero padding at x == 0
            part = jnp.where(col != 0, part, 0.0)
        elif dx == 2:    # reads column x+1: zero padding at x == W-1
            part = jnp.where(col != W - 1, part, 0.0)
        out = part if out is None else out + part

    out = out + b_ref[...]                                         # folded bias
    o_ref[0] = jnp.maximum(out, 0.0).astype(o_ref.dtype)


def _pick_row_tile(H, W, B, hsz, max_tn=2048):
    """Largest row tile th (th | H) with th*W a multiple of 128 (and of hsz),
    th*W <= max_tn, preferring >= 2 total grid steps (v7x megacore)."""
    valid = [t for t in range(H, 0, -1)
             if H % t == 0 and (t * W) % 128 == 0 and (t * W) % hsz == 0
             and t * W <= max_tn]
    if not valid:
        raise ValueError(
            f"No row tile found for H={H}, W={W}: need a divisor th of H with "
            f"th*W a multiple of {hsz} and <= {max_tn}.")
    for t in valid:                      # descending tile size
        if B * (H // t) >= 2:
            return t
    return valid[-1]


def img_input(x, w, b, gamma, beta, running_mean, running_var, eps=1e-5):
    """x: (B, Cin, H, W) NCHW. w: (Cout, Cin, 3, 3). Returns (B, Cout, H, W)."""
    B, Cin, H, W = x.shape
    Cout = w.shape[0]
    N = H * W

    # --- fold BatchNorm (eval) + conv bias into the conv weights (one-time) --
    scale = (jnp.asarray(gamma, jnp.float32)
             * lax.rsqrt(jnp.asarray(running_var, jnp.float32) + float(eps)))
    # (Cout, Cin, 3, 3) -> (9, Cout, Cin), tap-major (dy*3 + dx), BN-scaled.
    w_folded = (jnp.transpose(jnp.asarray(w, jnp.float32), (2, 3, 0, 1))
                .reshape(9, Cout, Cin) * scale[None, :, None]
                ).astype(jnp.bfloat16)
    b_folded = ((jnp.asarray(b, jnp.float32)
                 - jnp.asarray(running_mean, jnp.float32)) * scale
                + jnp.asarray(beta, jnp.float32)).reshape(Cout, 1)

    # --- tiling ---------------------------------------------------------
    hsz = 128 * ((2 * W + 2 + 127) // 128)    # halo block (>= 2W+2 lanes)
    th = _pick_row_tile(H, W, B, hsz)         # rows of output per grid step
    tn = th * W                               # output lanes per grid step
    HT = H // th
    Lpad = N + hsz                            # flattened padded input length

    # --- input: bf16, zero top/bottom rows, 1-elem front offset, flattened --
    # Layout: x_hflat[b, ci, 1 + (row + 1)*W + col] == x[b, ci, row, col];
    # everything else is zero.  Then conv tap (dy, dx) of output lane
    # p = y*W + x (tile-local) reads slab lane p + dy*W + dx, where the slab
    # for tile r is x_hflat[b, :, r*tn : r*tn + tn + hsz]  (body + halo).
    x_flat = x.astype(jnp.bfloat16).reshape(B, Cin, N)
    x_hflat = jnp.pad(x_flat, ((0, 0), (0, 0), (1 + W, Lpad - (1 + W) - N)))

    grid = (B, HT)
    kernel = functools.partial(img_input_kernel, W=W)

    # VMEM working set (double-buffered body + halo + output + weights) is a
    # few hundred KiB even at tn=2048, so the default scoped VMEM limit is
    # plenty on v5e/v6e/v7x; no vmem_limit_bytes override needed.
    out_flat = pl.pallas_call(
        kernel,
        out_shape=jax.ShapeDtypeStruct((B, Cout, N), jnp.float32),
        grid_spec=pltpu.PrefetchScalarGridSpec(
            num_scalar_prefetch=0,
            grid=grid,
            in_specs=[
                # body: this tile's own tn lanes
                pl.BlockSpec((1, Cin, tn), lambda bi, ri: (bi, 0, ri)),
                # halo: the next hsz lanes (the two rows below the tile)
                pl.BlockSpec((1, Cin, hsz),
                             lambda bi, ri: (bi, 0, (ri + 1) * (tn // hsz))),
                pl.BlockSpec((9, Cout, Cin), lambda bi, ri: (0, 0, 0)),
                pl.BlockSpec((Cout, 1), lambda bi, ri: (0, 0)),
            ],
            out_specs=pl.BlockSpec((1, Cout, tn), lambda bi, ri: (bi, 0, ri)),
        ),
        compiler_params=pltpu.CompilerParams(
            dimension_semantics=("parallel", "parallel")),
    )(x_hflat, x_hflat, w_folded, b_folded)

    # (B, Cout, N) -> (B, Cout, H, W): free reshape, no transpose.
    return out_flat.reshape(B, Cout, H, W)


def img_input_reference(x, w, b, gamma, beta, running_mean, running_var,
                        eps=1e-5):
    """Pure-JAX f32 reference mirroring the PyTorch forward (eval-mode BN)."""
    y = lax.conv_general_dilated(
        x.astype(jnp.float32), w.astype(jnp.float32),
        window_strides=(1, 1), padding=((1, 1), (1, 1)),
        dimension_numbers=("NCHW", "OIHW", "NCHW"))
    y = y + b.reshape(1, -1, 1, 1)
    scale = gamma.reshape(1, -1, 1, 1) * lax.rsqrt(
        running_var.reshape(1, -1, 1, 1) + eps)
    y = (y - running_mean.reshape(1, -1, 1, 1)) * scale + beta.reshape(1, -1, 1, 1)
    return jnp.maximum(y, 0.0)


if __name__ == "__main__":
    # Small shapes consistent with the module: in_ch=4, out_ch=8, 16x16 spatial.
    B, Cin, H, W = 2, 4, 16, 16
    Cout = 8

    key = jax.random.PRNGKey(0)
    k1, k2, k3, k4, k5, k6, k7 = jax.random.split(key, 7)

    x = jax.random.normal(k1, (B, Cin, H, W), dtype=jnp.float32)
    w = 0.1 * jax.random.normal(k2, (Cout, Cin, 3, 3), dtype=jnp.float32)
    b = 0.1 * jax.random.normal(k3, (Cout,), dtype=jnp.float32)

    # BatchNorm2d (eval mode) parameters: non-trivial so the BN path is
    # exercised (fresh-init would be gamma=1, beta=0, mean=0, var=1).
    gamma = 1.0 + 0.1 * jax.random.normal(k4, (Cout,), dtype=jnp.float32)
    beta = 0.1 * jax.random.normal(k5, (Cout,), dtype=jnp.float32)
    running_mean = 0.1 * jax.random.normal(k6, (Cout,), dtype=jnp.float32)
    running_var = jnp.abs(jax.random.normal(k7, (Cout,), dtype=jnp.float32)) + 0.5

    out = img_input(x, w, b, gamma, beta, running_mean, running_var)
    jax.block_until_ready(out)

    ref = img_input_reference(x, w, b, gamma, beta, running_mean, running_var)
    assert out.shape == (B, Cout, H, W)
    # bf16 MXU operands (per perf review) -> tolerance looser than pure f32.
    assert jnp.allclose(out, ref, atol=5e-2, rtol=5e-2), "mismatch vs reference"

    print("KERNEL_OK")
</pallas_src>

<mosaic_0001>
module attributes {stable_mosaic.version = 11 : i64} {
  func.func @img_input_kernel(%arg0: i32, %arg1: i32, %arg2: memref<1x4x256xbf16, #tpu.memory_space<vmem>>, %arg3: memref<1x4x128xbf16, #tpu.memory_space<vmem>>, %arg4: memref<9x8x4xbf16, #tpu.memory_space<vmem>>, %arg5: memref<8x1xf32, #tpu.memory_space<vmem>>, %arg6: memref<1x8x256xf32, #tpu.memory_space<vmem>>) attributes {dimension_semantics = [#tpu.dimension_semantics<parallel>, #tpu.dimension_semantics<parallel>], iteration_bounds = array<i64: 2, 1>, scalar_prefetch = 0 : i64, scratch_operands = 0 : i64, tpu.core_type = #tpu.core_type<tc>, window_params = [{transform_indices = @transform_0, window_bounds = array<i64: 1, 4, 256>}, {transform_indices = @transform_1, window_bounds = array<i64: 1, 4, 128>}, {pipeline_mode = #tpu.pipeline_mode<synchronous>, transform_indices = @transform_2, window_bounds = array<i64: 9, 8, 4>}, {pipeline_mode = #tpu.pipeline_mode<synchronous>, transform_indices = @transform_3, window_bounds = array<i64: 8, 1>}, {transform_indices = @transform_4, window_bounds = array<i64: 1, 8, 256>}]} {
    %c0 = arith.constant 0 : index
    %c0_0 = arith.constant 0 : index
    %c0_1 = arith.constant 0 : index
    %0 = vector.load %arg2[%c0, %c0_0, %c0_1] : memref<1x4x256xbf16, #tpu.memory_space<vmem>>, vector<1x4x256xbf16>
    %1 = vector.shape_cast %0 : vector<1x4x256xbf16> to vector<4x256xbf16>
    %c0_2 = arith.constant 0 : index
    %c0_3 = arith.constant 0 : index
    %c0_4 = arith.constant 0 : index
    %2 = vector.load %arg3[%c0_2, %c0_3, %c0_4] : memref<1x4x128xbf16, #tpu.memory_space<vmem>>, vector<1x4x128xbf16>
    %3 = vector.shape_cast %2 : vector<1x4x128xbf16> to vector<4x128xbf16>
    %4 = tpu.concatenate %1, %3 in 1 : vector<4x256xbf16>, vector<4x128xbf16> -> vector<4x384xbf16>
    %5 = tpu.iota {dimensions = array<i32: 1>} : vector<1x256xi32>
    %c16_i32 = arith.constant 16 : i32
    %c0_i32 = arith.constant 0 : i32
    %6 = arith.cmpi eq, %c16_i32, %c0_i32 : i32
    %c1_i32 = arith.constant 1 : i32
    %7 = arith.select %6, %c1_i32, %c16_i32 : i32
    %8 = vector.broadcast %7 : i32 to vector<1x256xi32>
    %9 = arith.remsi %5, %8 : vector<1x256xi32>
    %c0_i32_5 = arith.constant 0 : i32
    %10 = vector.broadcast %c0_i32_5 : i32 to vector<1x256xi32>
    %11 = arith.cmpi ne, %9, %10 : vector<1x256xi32>
    %c0_i32_6 = arith.constant 0 : i32
    %12 = vector.broadcast %c0_i32_6 : i32 to vector<1x256xi32>
    %13 = arith.cmpi slt, %9, %12 : vector<1x256xi32>
    %c0_i32_7 = arith.constant 0 : i32
    %14 = arith.cmpi slt, %7, %c0_i32_7 : i32
    %15 = vector.broadcast %14 : i1 to vector<1x256xi1>
    %16 = vector.broadcast %15 : vector<1x256xi1> to vector<1x256xi1>
    %17 = arith.xori %13, %16 : vector<1x256xi1>
    %18 = arith.andi %17, %11 : vector<1x256xi1>
    %19 = vector.broadcast %7 : i32 to vector<1x256xi32>
    %20 = arith.addi %9, %19 : vector<1x256xi32>
    %21 = arith.select %18, %20, %9 : vector<1x256xi1>, vector<1x256xi32>
    %22 = vector.extract_strided_slice %4 {offsets = [0, 0], sizes = [4, 256], strides = [1, 1]} : vector<4x384xbf16> to vector<4x256xbf16>
    %c0_8 = arith.constant 0 : index
    %c0_9 = arith.constant 0 : index
    %c0_10 = arith.constant 0 : index
    %23 = vector.load %arg4[%c0_8, %c0_9, %c0_10] : memref<9x8x4xbf16, #tpu.memory_space<vmem>>, vector<1x8x4xbf16>
    %24 = vector.shape_cast %23 : vector<1x8x4xbf16> to vector<8x4xbf16>
    %cst = arith.constant dense<0.000000e+00> : vector<8x256xf32>
    %25 = tpu.matmul %24, %22, %cst {dimension_numbers = #tpu.dot_dimension_numbers<[1], [0], [0], [1], [0, 0, 1, 1], [], []>} : vector<8x4xbf16>, vector<4x256xbf16>, vector<8x256xf32> -> vector<8x256xf32>
    %26 = vector.extract_strided_slice %4 {offsets = [0, 16], sizes = [4, 256], strides = [1, 1]} : vector<4x384xbf16> to vector<4x256xbf16>
    %c3 = arith.constant 3 : index
    %c0_11 = arith.constant 0 : index
    %c0_12 = arith.constant 0 : index
    %27 = vector.load %arg4[%c3, %c0_11, %c0_12] : memref<9x8x4xbf16, #tpu.memory_space<vmem>>, vector<1x8x4xbf16>
    %28 = vector.shape_cast %27 : vector<1x8x4xbf16> to vector<8x4xbf16>
    %cst_13 = arith.constant dense<0.000000e+00> : vector<8x256xf32>
    %29 = tpu.matmul %28, %26, %cst_13 {dimension_numbers = #tpu.dot_dimension_numbers<[1], [0], [0], [1], [0, 0, 1, 1], [], []>} : vector<8x4xbf16>, vector<4x256xbf16>, vector<8x256xf32> -> vector<8x256xf32>
    %30 = arith.addf %25, %29 : vector<8x256xf32>
    %31 = vector.extract_strided_slice %4 {offsets = [0, 32], sizes = [4, 256], strides = [1, 1]} : vector<4x384xbf16> to vector<4x256xbf16>
    %c6 = arith.constant 6 : index
    %c0_14 = arith.constant 0 : index
    %c0_15 = arith.constant 0 : index
    %32 = vector.load %arg4[%c6, %c0_14, %c0_15] : memref<9x8x4xbf16, #tpu.memory_space<vmem>>, vector<1x8x4xbf16>
    %33 = vector.shape_cast %32 : vector<1x8x4xbf16> to vector<8x4xbf16>
    %cst_16 = arith.constant dense<0.000000e+00> : vector<8x256xf32>
    %34 = tpu.matmul %33, %31, %cst_16 {dimension_numbers = #tpu.dot_dimension_numbers<[1], [0], [0], [1], [0, 0, 1, 1], [], []>} : vector<8x4xbf16>, vector<4x256xbf16>, vector<8x256xf32> -> vector<8x256xf32>
    %35 = arith.addf %30, %34 : vector<8x256xf32>
    %c0_i32_17 = arith.constant 0 : i32
    %36 = vector.broadcast %c0_i32_17 : i32 to vector<1x256xi32>
    %37 = arith.cmpi ne, %21, %36 : vector<1x256xi32>
    %cst_18 = arith.constant 0.000000e+00 : f32
    %38 = vector.shape_cast %37 : vector<1x256xi1> to vector<1x256xi1>
    %39 = vector.broadcast %38 : vector<1x256xi1> to vector<8x256xi1>
    %40 = vector.broadcast %cst_18 : f32 to vector<8x256xf32>
    %41 = arith.select %39, %35, %40 : vector<8x256xi1>, vector<8x256xf32>
    %42 = vector.extract_strided_slice %4 {offsets = [0, 1], sizes = [4, 256], strides = [1, 1]} : vector<4x384xbf16> to vector<4x256xbf16>
    %c1 = arith.constant 1 : index
    %c0_19 = arith.constant 0 : index
    %c0_20 = arith.constant 0 : index
    %43 = vector.load %arg4[%c1, %c0_19, %c0_20] : memref<9x8x4xbf16, #tpu.memory_space<vmem>>, vector<1x8x4xbf16>
    %44 = vector.shape_cast %43 : vector<1x8x4xbf16> to vector<8x4xbf16>
    %cst_21 = arith.constant dense<0.000000e+00> : vector<8x256xf32>
    %45 = tpu.matmul %44, %42, %cst_21 {dimension_numbers = #tpu.dot_dimension_numbers<[1], [0], [0], [1], [0, 0, 1, 1], [], []>} : vector<8x4xbf16>, vector<4x256xbf16>, vector<8x256xf32> -> vector<8x256xf32>
    %46 = vector.extract_strided_slice %4 {offsets = [0, 17], sizes = [4, 256], strides = [1, 1]} : vector<4x384xbf16> to vector<4x256xbf16>
    %c4 = arith.constant 4 : index
    %c0_22 = arith.constant 0 : index
    %c0_23 = arith.constant 0 : index
    %47 = vector.load %arg4[%c4, %c0_22, %c0_23] : memref<9x8x4xbf16, #tpu.memory_space<vmem>>, vector<1x8x4xbf16>
    %48 = vector.shape_cast %47 : vector<1x8x4xbf16> to vector<8x4xbf16>
    %cst_24 = arith.constant dense<0.000000e+00> : vector<8x256xf32>
    %49 = tpu.matmul %48, %46, %cst_24 {dimension_numbers = #tpu.dot_dimension_numbers<[1], [0], [0], [1], [0, 0, 1, 1], [], []>} : vector<8x4xbf16>, vector<4x256xbf16>, vector<8x256xf32> -> vector<8x256xf32>
    %50 = arith.addf %45, %49 : vector<8x256xf32>
    %51 = vector.extract_strided_slice %4 {offsets = [0, 33], sizes = [4, 256], strides = [1, 1]} : vector<4x384xbf16> to vector<4x256xbf16>
    %c7 = arith.constant 7 : index
    %c0_25 = arith.constant 0 : index
    %c0_26 = arith.constant 0 : index
    %52 = vector.load %arg4[%c7, %c0_25, %c0_26] : memref<9x8x4xbf16, #tpu.memory_space<vmem>>, vector<1x8x4xbf16>
    %53 = vector.shape_cast %52 : vector<1x8x4xbf16> to vector<8x4xbf16>
    %cst_27 = arith.constant dense<0.000000e+00> : vector<8x256xf32>
    %54 = tpu.matmul %53, %51, %cst_27 {dimension_numbers = #tpu.dot_dimension_numbers<[1], [0], [0], [1], [0, 0, 1, 1], [], []>} : vector<8x4xbf16>, vector<4x256xbf16>, vector<8x256xf32> -> vector<8x256xf32>
    %55 = arith.addf %50, %54 : vector<8x256xf32>
    %56 = arith.addf %41, %55 : vector<8x256xf32>
    %57 = vector.extract_strided_slice %4 {offsets = [0, 2], sizes = [4, 256], strides = [1, 1]} : vector<4x384xbf16> to vector<4x256xbf16>
    %c2 = arith.constant 2 : index
    %c0_28 = arith.constant 0 : index
    %c0_29 = arith.constant 0 : index
    %58 = vector.load %arg4[%c2, %c0_28, %c0_29] : memref<9x8x4xbf16, #tpu.memory_space<vmem>>, vector<1x8x4xbf16>
    %59 = vector.shape_cast %58 : vector<1x8x4xbf16> to vector<8x4xbf16>
    %cst_30 = arith.constant dense<0.000000e+00> : vector<8x256xf32>
    %60 = tpu.matmul %59, %57, %cst_30 {dimension_numbers = #tpu.dot_dimension_numbers<[1], [0], [0], [1], [0, 0, 1, 1], [], []>} : vector<8x4xbf16>, vector<4x256xbf16>, vector<8x256xf32> -> vector<8x256xf32>
    %61 = vector.extract_strided_slice %4 {offsets = [0, 18], sizes = [4, 256], strides = [1, 1]} : vector<4x384xbf16> to vector<4x256xbf16>
    %c5 = arith.constant 5 : index
    %c0_31 = arith.constant 0 : index
    %c0_32 = arith.constant 0 : index
    %62 = vector.load %arg4[%c5, %c0_31, %c0_32] : memref<9x8x4xbf16, #tpu.memory_space<vmem>>, vector<1x8x4xbf16>
    %63 = vector.shape_cast %62 : vector<1x8x4xbf16> to vector<8x4xbf16>
    %cst_33 = arith.constant dense<0.000000e+00> : vector<8x256xf32>
    %64 = tpu.matmul %63, %61, %cst_33 {dimension_numbers = #tpu.dot_dimension_numbers<[1], [0], [0], [1], [0, 0, 1, 1], [], []>} : vector<8x4xbf16>, vector<4x256xbf16>, vector<8x256xf32> -> vector<8x256xf32>
    %65 = arith.addf %60, %64 : vector<8x256xf32>
    %66 = vector.extract_strided_slice %4 {offsets = [0, 34], sizes = [4, 256], strides = [1, 1]} : vector<4x384xbf16> to vector<4x256xbf16>
    %c8 = arith.constant 8 : index
    %c0_34 = arith.constant 0 : index
    %c0_35 = arith.constant 0 : index
    %67 = vector.load %arg4[%c8, %c0_34, %c0_35] : memref<9x8x4xbf16, #tpu.memory_space<vmem>>, vector<1x8x4xbf16>
    %68 = vector.shape_cast %67 : vector<1x8x4xbf16> to vector<8x4xbf16>
    %cst_36 = arith.constant dense<0.000000e+00> : vector<8x256xf32>
    %69 = tpu.matmul %68, %66, %cst_36 {dimension_numbers = #tpu.dot_dimension_numbers<[1], [0], [0], [1], [0, 0, 1, 1], [], []>} : vector<8x4xbf16>, vector<4x256xbf16>, vector<8x256xf32> -> vector<8x256xf32>
    %70 = arith.addf %65, %69 : vector<8x256xf32>
    %c15_i32 = arith.constant 15 : i32
    %71 = vector.broadcast %c15_i32 : i32 to vector<1x256xi32>
    %72 = arith.cmpi ne, %21, %71 : vector<1x256xi32>
    %cst_37 = arith.constant 0.000000e+00 : f32
    %73 = vector.shape_cast %72 : vector<1x256xi1> to vector<1x256xi1>
    %74 = vector.broadcast %73 : vector<1x256xi1> to vector<8x256xi1>
    %75 = vector.broadcast %cst_37 : f32 to vector<8x256xf32>
    %76 = arith.select %74, %70, %75 : vector<8x256xi1>, vector<8x256xf32>
    %77 = arith.addf %56, %76 : vector<8x256xf32>
    %c0_38 = arith.constant 0 : index
    %c0_39 = arith.constant 0 : index
    %78 = vector.load %arg5[%c0_38, %c0_39] : memref<8x1xf32, #tpu.memory_space<vmem>>, vector<8x1xf32>
    %79 = vector.broadcast %78 : vector<8x1xf32> to vector<8x256xf32>
    %80 = arith.addf %77, %79 : vector<8x256xf32>
    %cst_40 = arith.constant 0.000000e+00 : f32
    %81 = vector.broadcast %cst_40 : f32 to vector<8x256xf32>
    %82 = arith.maximumf %80, %81 : vector<8x256xf32>
    %c0_41 = arith.constant 0 : index
    %c0_42 = arith.constant 0 : index
    %c0_43 = arith.constant 0 : index
    %83 = vector.load %arg6[%c0_41, %c0_42, %c0_43] : memref<1x8x256xf32, #tpu.memory_space<vmem>>, vector<1x8x256xf32>
    %84 = vector.shape_cast %83 : vector<1x8x256xf32> to vector<8x256xf32>
    %85 = vector.shape_cast %82 : vector<8x256xf32> to vector<1x8x256xf32>
    tpu.vector_store %arg6[%c0_41, %c0_42, %c0_43], %85 {strides = array<i32>} : memref<1x8x256xf32, #tpu.memory_space<vmem>>, vector<1x8x256xf32>,
    return
  }
  func.func @transform_0(%arg0: i32, %arg1: i32) -> (i32, i32, i32) {
    %c0_i32 = arith.constant 0 : i32
    %c0_i32_0 = arith.constant 0 : i32
    return %arg0, %c0_i32, %arg1 : i32, i32, i32
  }
  func.func @transform_1(%arg0: i32, %arg1: i32) -> (i32, i32, i32) {
    %c1_i32 = arith.constant 1 : i32
    %0 = arith.addi %arg1, %c1_i32 : i32
    %c2_i32 = arith.constant 2 : i32
    %1 = arith.muli %0, %c2_i32 : i32
    %c0_i32 = arith.constant 0 : i32
    %c0_i32_0 = arith.constant 0 : i32
    return %arg0, %c0_i32, %1 : i32, i32, i32
  }
  func.func @transform_2(%arg0: i32, %arg1: i32) -> (i32, i32, i32) {
    %c0_i32 = arith.constant 0 : i32
    %c0_i32_0 = arith.constant 0 : i32
    %c0_i32_1 = arith.constant 0 : i32
    %c0_i32_2 = arith.constant 0 : i32
    return %c0_i32, %c0_i32_0, %c0_i32_1 : i32, i32, i32
  }
  func.func @transform_3(%arg0: i32, %arg1: i32) -> (i32, i32) {
    %c0_i32 = arith.constant 0 : i32
    %c0_i32_0 = arith.constant 0 : i32
    %c0_i32_1 = arith.constant 0 : i32
    return %c0_i32, %c0_i32_0 : i32, i32
  }
  func.func @transform_4(%arg0: i32, %arg1: i32) -> (i32, i32, i32) {
    %c0_i32 = arith.constant 0 : i32
    %c0_i32_0 = arith.constant 0 : i32
    return %arg0, %c0_i32, %arg1 : i32, i32, i32
  }
}

</mosaic_0001>

<llo_original>
// kernel: tpu_custom_call.1
$region0: #{tpu_custom_call.1}
  #allocation0 [shape = 'u32[]', space=smem, size = 0x4, offset = 0x4, fixed_abs, tag = 'smem constant byte address 0x4 - core index']
  #allocation1 [shape = 'u32[144,128]{1,0:T(1,128)}', space=vmem, size = 0x12000, scoped, tag = 'internal scratch']
  %s0 = inlined_call_operand.vmem [shape: bf16[2,4,384], index: 0, kind: input, shape index: {}]
  %s1 = inlined_call_operand.vmem [shape: bf16[2,4,384], index: 1, kind: input, shape index: {}]
  %s2 = inlined_call_operand.vmem [shape: bf16[9,8,4], index: 2, kind: input, shape index: {}]
  %s3 = inlined_call_operand.vmem [shape: f32[8,1], index: 3, kind: input, shape index: {}]
  %s4 = inlined_call_operand.hbm [shape: f32[2,8,256], index: 4, kind: output, shape index: {}]
  %s5 = sld [smem:[#allocation0]]
  $region49: #{tpu_custom_call.1} parent=0
    _
  %s7 = ssub.s32 1, %s5
  %s8 = scalar_select 0, %s7, %s5
  $region1: #{tpu_custom_call.1} parent=0
    #allocation2 [shape = 'u8[16384]{0}', space=vmem, size = 0x4000, scoped, tag = 'output window, operand 0']
    #allocation3 [shape = 's32[2]{0}', space=sflag, size = 0x8, scoped, tag = 'scoped memory for tpu_custom_call.1']
    %9 = vsyncpa [#allocation3], 0
    %s10 = scalar_lea.sflag [#allocation3], 1
    %11 = vsyncpa %s10, 0
    loop: start=0, step=1, limit=4
    $region2: #{tpu_custom_call.1} parent=1 // loop_pre_header
      _
    $region3: #{tpu_custom_call.1} parent=1 // loop_header
      %s13 = sphi 0, %s17
      %p14 = scmp.ge.s32.totalorder %s13, 4
      %s20 = sphi 0, %s32
      %s21 = sphi 0, %s28
      %s22 = sphi 0, %s20
      %s23 = sphi 0, %s21
      %s24 = sphi 0, %s22
      %s25 = sphi 0, %s23
      %s37 = sphi 0, %s39
      %s40 = sphi 0, %s37
      %s41 = sphi 0, %s40
      %s57 = sphi 0, %s41
      %s69 = sphi 0, %s71
      %s72 = sphi 0, %s69
      %s73 = sphi 0, %s72
      %s89 = sphi 0, %s73
      %s93 = sphi 0, %s93
      %s95 = sphi 0, %s93
      %s96 = sphi 0, %s95
      %s110 = sphi 0, %s96
      %s114 = sphi 0, %s114
      %s116 = sphi 0, %s114
      %s117 = sphi 0, %s116
      %s131 = sphi 0, %s117
      %s139 = sphi 0, %s141
      %s142 = sphi 0, %s139
      %s143 = sphi 0, %s142
      %s159 = sphi 0, %s143
    $region4: #{tpu_custom_call.1} parent=1 // loop_header_branch
      %16 = sbr.rel (%p14) target = $region8
    $region5: #{tpu_custom_call.1} parent=1 // loop_body
      %s18 = ssub.s32 %s13, 1
      %s19 = ssub.s32 %s13, 2
      %s26 = sadd.s32 1, %s21
      %p27 = scmp.ge.s32.totalorder %s26, 1
      %s28 = scalar_select %p27, 0, %s26
      %s29 = sadd.s32 1, %s20
      %s30 = scalar_select %p27, %s29, %s20
      %p31 = scmp.ge.s32.totalorder %s30, 2
      %s32 = scalar_select %p31, 0, %s30
      %s33 = ssub.s32 %s20, %s32
      %s34 = ssub.s32 %s21, %s28
      %s35 = sor.u32 %s33, %s34
      %p36 = scmp.eq.s32.totalorder %s35, 0
      %s38 = sadd.s32 %s37, 1
      %s39 = scalar_select %p36, %s37, %s38
      %p42 = pneg %p36
      %p43 = scmp.eq.s32.totalorder %s13, 1
      %p44 = por %p42, %p43
      %p45 = scmp.ne.s32.totalorder %s37, %s40
      %p46 = scmp.eq.s32.totalorder %s13, 0
      %p47 = por %p45, %p46
      %p48 = scmp.ne.s32.totalorder %s37, %s40
      %p49 = scmp.eq.s32.totalorder %s18, 1
      %p50 = por %p48, %p49
      %p51 = scmp.ne.s32.totalorder %s40, %s41
      %p52 = scmp.eq.s32.totalorder %s18, 0
      %p53 = por %p51, %p52
      %p54 = scmp.ne.s32.totalorder %s40, %s41
      %p55 = scmp.eq.s32.totalorder %s19, 1
      %p56 = por %p54, %p55
      %p58 = scmp.ne.s32.totalorder %s41, %s57
      %p59 = scmp.eq.s32.totalorder %s19, 0
      %p60 = por %p58, %p59
      %s61 = sadd.s32 %s21, 1
      %s62 = smul.u32 %s61, 2
      %s63 = sadd.s32 %s28, 1
      %s64 = smul.u32 %s63, 2
      %s65 = ssub.s32 %s20, %s32
      %s66 = ssub.s32 %s62, %s64
      %s67 = sor.u32 %s65, %s66
      %p68 = scmp.eq.s32.totalorder %s67, 0
      %s70 = sadd.s32 %s69, 1
      %s71 = scalar_select %p68, %s69, %s70
      %p74 = pneg %p68
      %p75 = scmp.eq.s32.totalorder %s13, 1
      %p76 = por %p74, %p75
      %p77 = scmp.ne.s32.totalorder %s69, %s72
      %p78 = scmp.eq.s32.totalorder %s13, 0
      %p79 = por %p77, %p78
      %p80 = scmp.ne.s32.totalorder %s69, %s72
      %p81 = scmp.eq.s32.totalorder %s18, 1
      %p82 = por %p80, %p81
      %p83 = scmp.ne.s32.totalorder %s72, %s73
      %p84 = scmp.eq.s32.totalorder %s18, 0
      %p85 = por %p83, %p84
      %p86 = scmp.ne.s32.totalorder %s72, %s73
      %p87 = scmp.eq.s32.totalorder %s19, 1
      %p88 = por %p86, %p87
      %p90 = scmp.ne.s32.totalorder %s73, %s89
      %p91 = scmp.eq.s32.totalorder %s19, 0
      %p92 = por %p90, %p91
      %s94 = sadd.s32 %s93, 1
      %p97 = scmp.eq.s32.totalorder %s13, 1
      %p98 = scmp.ne.s32.totalorder %s93, %s95
      %p99 = scmp.eq.s32.totalorder %s13, 0
      %p100 = por %p98, %p99
      %p101 = scmp.ne.s32.totalorder %s93, %s95
      %p102 = scmp.eq.s32.totalorder %s18, 1
      %p103 = por %p101, %p102
      %p104 = scmp.ne.s32.totalorder %s95, %s96
      %p105 = scmp.eq.s32.totalorder %s18, 0
      %p106 = por %p104, %p105
      %p107 = scmp.ne.s32.totalorder %s95, %s96
      %p108 = scmp.eq.s32.totalorder %s19, 1
      %p109 = por %p107, %p108
      %p111 = scmp.ne.s32.totalorder %s96, %s110
      %p112 = scmp.eq.s32.totalorder %s19, 0
      %p113 = por %p111, %p112
      %s115 = sadd.s32 %s114, 1
      %p118 = scmp.eq.s32.totalorder %s13, 1
      %p119 = scmp.ne.s32.totalorder %s114, %s116
      %p120 = scmp.eq.s32.totalorder %s13, 0
      %p121 = por %p119, %p120
      %p122 = scmp.ne.s32.totalorder %s114, %s116
      %p123 = scmp.eq.s32.totalorder %s18, 1
      %p124 = por %p122, %p123
      %p125 = scmp.ne.s32.totalorder %s116, %s117
      %p126 = scmp.eq.s32.totalorder %s18, 0
      %p127 = por %p125, %p126
      %p128 = scmp.ne.s32.totalorder %s116, %s117
      %p129 = scmp.eq.s32.totalorder %s19, 1
      %p130 = por %p128, %p129
      %p132 = scmp.ne.s32.totalorder %s117, %s131
      %p133 = scmp.eq.s32.totalorder %s19, 0
      %p134 = por %p132, %p133
      %s135 = ssub.s32 %s20, %s32
      %s136 = ssub.s32 %s21, %s28
      %s137 = sor.u32 %s135, %s136
      %p138 = scmp.eq.s32.totalorder %s137, 0
      %s140 = sadd.s32 %s139, 1
      %s141 = scalar_select %p138, %s139, %s140
      %p144 = pneg %p138
      %p145 = scmp.eq.s32.totalorder %s13, 1
      %p146 = por %p144, %p145
      %p147 = scmp.ne.s32.totalorder %s139, %s142
      %p148 = scmp.eq.s32.totalorder %s13, 0
      %p149 = por %p147, %p148
      %p150 = scmp.ne.s32.totalorder %s139, %s142
      %p151 = scmp.eq.s32.totalorder %s18, 1
      %p152 = por %p150, %p151
      %p153 = scmp.ne.s32.totalorder %s142, %s143
      %p154 = scmp.eq.s32.totalorder %s18, 0
      %p155 = por %p153, %p154
      %p156 = scmp.ne.s32.totalorder %s142, %s143
      %p157 = scmp.eq.s32.totalorder %s19, 1
      %p158 = por %p156, %p157
      %p160 = scmp.ne.s32.totalorder %s143, %s159
      %p161 = scmp.eq.s32.totalorder %s19, 0
      %p162 = por %p160, %p161
      %p163 = scmp.le.s32.totalorder 1, %s13
      %p164 = scmp.lt.s32.totalorder %s13, 3
      %p165 = pnand %p163, %p164
      %p166 = pneg %p165
      // Predicated region
      $region9: #{tpu_custom_call.1} parent=5 // pred_check
        _
      $region10: #{tpu_custom_call.1} parent=5 // pred_check_branch
        %168 = sbr.rel (%p165) target = $region12
      $region11: #{tpu_custom_call.1} parent=5 // pred_region
        %s169 = ssub.s32 %s13, 1
        // Predicated region
        $region13: #{tpu_custom_call.1} parent=11 // pred_check
          %p170 = pneg %p106
        $region14: #{tpu_custom_call.1} parent=11 // pred_check_branch
          %172 = sbr.rel (%p170) target = $region16
        $region15: #{tpu_custom_call.1} parent=11 // pred_region
          _
        $region16: #{tpu_custom_call.1} parent=11 // pred_fallthru
          _
        // Predicated region
        $region17: #{tpu_custom_call.1} parent=11 // pred_check
          %p173 = pneg %p127
        $region18: #{tpu_custom_call.1} parent=11 // pred_check_branch
          %175 = sbr.rel (%p173) target = $region20
        $region19: #{tpu_custom_call.1} parent=11 // pred_region
          _
        $region20: #{tpu_custom_call.1} parent=11 // pred_fallthru
          _
      $region12: #{tpu_custom_call.1} parent=5 // pred_fallthru
        _
      %p176 = scmp.lt.s32.totalorder %s13, 2
      // Predicated region
      $region21: #{tpu_custom_call.1} parent=5 // pred_check
        %p177 = pneg %p176
      $region22: #{tpu_custom_call.1} parent=5 // pred_check_branch
        %179 = sbr.rel (%p177) target = $region24
      $region23: #{tpu_custom_call.1} parent=5 // pred_region
        // Predicated region
        $region25: #{tpu_custom_call.1} parent=23 // pred_check
          %p180 = pneg %p47
        $region26: #{tpu_custom_call.1} parent=23 // pred_check_branch
          %182 = sbr.rel (%p180) target = $region28
        $region27: #{tpu_custom_call.1} parent=23 // pred_region
          %s183 = smul.u32 2, %s21
          %s184 = ssub.s32 3, %s183
          %p185 = scmp.lt.s32.totalorder %s184, 2
          %s186 = scalar_select %p185, %s184, 2
          %s187 = smul.u32 32, %s186
          %p188 = scmp.lt.s32.totalorder %s20, 1
          %s189 = scalar_select %p188, %s20, 1
          %p190 = scmp.lt.s32.totalorder %s183, 2
          %s191 = scalar_select %p190, %s183, 2
          %s192 = smul.addr %s189, 3
          %s193 = sadd.s32 %s191, %s192
          %s194 = smul.addr %s193, 2
          %s195 = scalar_lea.vmem %s0, %s194
          %s196 = smul.u32 2, %s21
          %s197 = ssub.s32 3, %s196
          %p198 = scmp.lt.s32.totalorder %s197, 2
          %s199 = scalar_select %p198, %s197, 2
          %s200 = smul.u32 32, %s199
        $region28: #{tpu_custom_call.1} parent=23 // pred_fallthru
          _
        // Predicated region
        $region29: #{tpu_custom_call.1} parent=23 // pred_check
          %p201 = pneg %p79
        $region30: #{tpu_custom_call.1} parent=23 // pred_check_branch
          %203 = sbr.rel (%p201) target = $region32
        $region31: #{tpu_custom_call.1} parent=23 // pred_region
          %s204 = sadd.s32 %s21, 1
          %s205 = smul.u32 %s204, 2
          %p206 = scmp.lt.s32.totalorder %s20, 1
          %s207 = scalar_select %p206, %s20, 1
          %p208 = scmp.lt.s32.totalorder %s205, 2
          %s209 = scalar_select %p208, %s205, 2
          %s210 = smul.addr %s207, 3
          %s211 = sadd.s32 %s209, %s210
          %s212 = smul.addr %s211, 2
          %s213 = scalar_lea.vmem %s1, %s212
          %s214 = sadd.s32 %s21, 1
          %s215 = smul.u32 %s214, 2
        $region32: #{tpu_custom_call.1} parent=23 // pred_fallthru
          _
      $region24: #{tpu_custom_call.1} parent=5 // pred_fallthru
        _
      %p216 = scmp.le.s32.totalorder 1, %s13
      %p217 = scmp.lt.s32.totalorder %s13, 3
      %p218 = pnand %p216, %p217
      %p219 = pneg %p218
      // Predicated region
      $region33: #{tpu_custom_call.1} parent=5 // pred_check
        _
      $region34: #{tpu_custom_call.1} parent=5 // pred_check_branch
        %221 = sbr.rel (%p218) target = $region36
      $region35: #{tpu_custom_call.1} parent=5 // pred_region
        %s222 = ssub.s32 %s13, 1
        %s223 = smul.u32 2, %s23
        %s224 = ssub.s32 3, %s223
        %p225 = scmp.lt.s32.totalorder %s224, 2
        %s226 = scalar_select %p225, %s224, 2
        %s227 = smul.u32 32, %s226
        %p228 = scmp.lt.s32.totalorder %s22, 1
        %s229 = scalar_select %p228, %s22, 1
        %p230 = scmp.lt.s32.totalorder %s223, 2
        %s231 = scalar_select %p230, %s223, 2
        %s232 = smul.addr %s229, 3
        %s233 = sadd.s32 %s231, %s232
        %s234 = smul.addr %s233, 2
        %s235 = scalar_lea.vmem %s0, %s234
        %p236 = pneg %p53
        %p237 = pneg %p50
        %s238 = sadd.s32 %s23, 1
        %s239 = smul.u32 %s238, 2
        %p240 = scmp.lt.s32.totalorder %s22, 1
        %s241 = scalar_select %p240, %s22, 1
        %p242 = scmp.lt.s32.totalorder %s239, 2
        %s243 = scalar_select %p242, %s239, 2
        %s244 = smul.addr %s241, 3
        %s245 = sadd.s32 %s243, %s244
        %s246 = smul.addr %s245, 2
        %s247 = scalar_lea.vmem %s1, %s246
        %p248 = pneg %p85
        %p249 = pneg %p82
        %p250 = pneg %p106
        %p251 = pneg %p103
        %p252 = pneg %p127
        %p253 = pneg %p124
        %p254 = pneg %p155
        %p255 = pneg %p152
        %s256 = sand.u32 %s142, 1
        %s257 = scalar_lea.sflag [#allocation3], %s256
        %s258 = sand.u32 %s142, 1
        %s259 = smul.addr %s258, 16
        %s260 = scalar_lea.vmem [#allocation2], %s259
        %s261 = smul.u32 2, %s23
        %s262 = ssub.s32 3, %s261
        %p263 = scmp.lt.s32.totalorder %s262, 2
        %s264 = scalar_select %p263, %s262, 2
        %s265 = smul.u32 32, %s264
        %p266 = scmp.lt.s32.totalorder %s22, 1
        %s267 = scalar_select %p266, %s22, 1
        %p268 = scmp.lt.s32.totalorder %s261, 2
        %s269 = scalar_select %p268, %s261, 2
        %s270 = smul.addr %s267, 3
        %s271 = sadd.s32 %s269, %s270
        %s272 = smul.addr %s271, 2
        %s273 = scalar_lea.vmem %s0, %s272
        %s274 = smul.u32 2, %s23
        %s275 = ssub.s32 3, %s274
        %p276 = scmp.lt.s32.totalorder %s275, 2
        %s277 = scalar_select %p276, %s275, 2
        %s278 = smul.u32 32, %s277
        %s279 = sadd.s32 %s23, 1
        %s280 = smul.u32 %s279, 2
        %p281 = scmp.lt.s32.totalorder %s22, 1
        %s282 = scalar_select %p281, %s22, 1
        %p283 = scmp.lt.s32.totalorder %s280, 2
        %s284 = scalar_select %p283, %s280, 2
        %s285 = smul.addr %s282, 3
        %s286 = sadd.s32 %s284, %s285
        %s287 = smul.addr %s286, 2
        %s288 = scalar_lea.vmem %s1, %s287
        %s289 = sadd.s32 %s23, 1
        %s290 = smul.u32 %s289, 2
        %s291 = smul.u32 2, %s23
        %v293 = vld [vmem:[%s273] sm:$0xf]
        %v294 = vld [vmem:[%s288] sm:$0x3]
        %v297 = vunpack.c.l.s4 1983009808
        %v298 = vunpack.c.0.s8 %v297
        %v299 = vlaneseq
        %v300 = vshrl.u32 %v299, 7
        %v301 = vsub.s32 %v298, %v300
        %v302 = vrot.slane %v293, %v301
        %v303 = vcombine.high %v302, %v302
        %v304 = vlaneseq
        %v305 = vand.u32 %v304, 127
        %v306 = vadd.s32 %v305, 128
        %vm307 = vcmp.lt.s32.totalorder %v305, 0
        %v308 = vsub.s32 0, %v305
        %v309 = vsel %vm307, %v308, %v305
        %v310 = vshrl.u32 %v309, 4
        %v311 = vand.u32 %v309, 15
        %v312 = vsub.s32 0, %v311
        %v313 = vsel %vm307, %v312, %v311
        %vm314 = vcmp.lt.s32.totalorder %v306, 0
        %v315 = vsub.s32 0, %v306
        %v316 = vsel %vm314, %v315, %v306
        %v317 = vshrl.u32 %v316, 4
        %v318 = vand.u32 %v316, 15
        %v319 = vsub.s32 0, %v318
        %v320 = vsel %vm314, %v319, %v318
        %vm321 = vcmp.ne.s32.totalorder %v313, 0
        %vm322 = vcmp.ne.s32.totalorder %v320, 0
        %vm323 = vcmp.lt.s32.totalorder %v313, 0
        %vm324 = vcmp.lt.s32.totalorder %v320, 0
        %vm325 = vmand %vm323, %vm321
        %vm326 = vmand %vm324, %vm322
        %v327 = vadd.s32 %v313, 16
        %v328 = vadd.s32 %v320, 16
        %v329 = vsel %vm325, %v327, %v313
        %v330 = vsel %vm326, %v328, %v320
        %v331 = vld [vmem:[%s2] sm:$0xf]
        %s332 = scalar_lea.vmem %s2, 12
        %v333 = vld [vmem:[%s332] sm:$0xf]
        %335 = vrot.lane.b32.xlu0 %v302, 112
        %v336 = vpop.permute.xlu0 %335
        %337 = vrot.lane.b32.xlu0 %v303, 112
        %v338 = vpop.permute.xlu0 %337
        %339 = vrot.lane.b32.xlu0 %v294, 112
        %v340 = vpop.permute.xlu0 %339
        %vm341 = vcmask 916480
        %v342 = vsel %vm341, %v336, %v338
        %v343 = vsel %vm341, %v338, %v340
        %vm344 = vcmask 31744
        %v346 = vsel %vm344, %v333, 0
        %vm348 = vcmask 1041408
        %v350 = vsel %vm348, %v342, 0
        %v353 = vsel %vm348, %v343, 0
        %355 = vmatprep.subr.bf16.mxu0 %v353
        %356 = vmatpush1.bf16.msra.mxu0 %v350
        %357 = vmatprep.subr.bf16.mxu0 0
        %358 = vmatpush1.bf16.msra.mxu0 0
        %359 = vmatprep.subr.bf16.mxu0 0
        %360 = vmatpush1.bf16.msra.mxu0 0
        %361 = vmatprep.subr.bf16.mxu0 0
        %362 = vmatpush1.bf16.msra.mxu0 0
        %363 = vmatprep.subr.bf16.mxu0 0
        %364 = vmatpush1.bf16.msra.mxu0 0
        %365 = vmatprep.subr.bf16.mxu0 0
        %366 = vmatpush1.bf16.msra.mxu0 0
        %367 = vmatprep.subr.bf16.mxu0 0
        %368 = vmatpush1.bf16.msra.mxu0 0
        %369 = vmatprep.subr.bf16.mxu0 0
        %370 = vmatpush1.bf16.msra.mxu0 0
        %371 = vmatprep.subr.bf16.mxu0 0
        %372 = vmatpush1.bf16.msra.mxu0 0
        %373 = vmatprep.subr.bf16.mxu0 0
        %374 = vmatpush1.bf16.msra.mxu0 0
        %375 = vmatprep.subr.bf16.mxu0 0
        %376 = vmatpush1.bf16.msra.mxu0 0
        %377 = vmatprep.subr.bf16.mxu0 0
        %378 = vmatpush1.bf16.msra.mxu0 0
        %379 = vmatprep.subr.bf16.mxu0 0
        %380 = vmatpush1.bf16.msra.mxu0 0
        %381 = vmatprep.subr.bf16.mxu0 0
        %382 = vmatpush1.bf16.msra.mxu0 0
        %383 = vmatprep.subr.bf16.mxu0 0
        %384 = vmatpush1.bf16.msra.mxu0 0
        %385 = vmatprep.subr.bf16.mxu0 0
        %386 = vmatpush1.bf16.msra.mxu0 0
        %387 = vmatprep.mubr.bf16.mxu0 0
        %388 = vmatmul.mubr.bf16.gmra.mrb[0].mxu0 %v346
        %v389 = vpop.f32.mrb[0].mxu0
        %v390 = vadd.f32 0.0, %v389
        %v391 = vpop.f32.mrb[0].mxu0
        %v392 = vadd.f32 0.0, %v391
        %v393 = vpop.f32.mrb[0].mxu0
        %v394 = vpop.f32.mrb[0].mxu0
        %395 = vdwg.mxu0
        %v397 = vsel %vm344, %v331, 0
        %v400 = vsel %vm348, %v302, 0
        %v403 = vsel %vm348, %v303, 0
        %405 = vmatprep.subr.bf16.mxu0 %v403
        %406 = vmatpush1.bf16.msra.mxu0 %v400
        %407 = vmatprep.subr.bf16.mxu0 0
        %408 = vmatpush1.bf16.msra.mxu0 0
        %409 = vmatprep.subr.bf16.mxu0 0
        %410 = vmatpush1.bf16.msra.mxu0 0
        %411 = vmatprep.subr.bf16.mxu0 0
        %412 = vmatpush1.bf16.msra.mxu0 0
        %413 = vmatprep.subr.bf16.mxu0 0
        %414 = vmatpush1.bf16.msra.mxu0 0
        %415 = vmatprep.subr.bf16.mxu0 0
        %416 = vmatpush1.bf16.msra.mxu0 0
        %417 = vmatprep.subr.bf16.mxu0 0
        %418 = vmatpush1.bf16.msra.mxu0 0
        %419 = vmatprep.subr.bf16.mxu0 0
        %420 = vmatpush1.bf16.msra.mxu0 0
        %421 = vmatprep.subr.bf16.mxu0 0
        %422 = vmatpush1.bf16.msra.mxu0 0
        %423 = vmatprep.subr.bf16.mxu0 0
        %424 = vmatpush1.bf16.msra.mxu0 0
        %425 = vmatprep.subr.bf16.mxu0 0
        %426 = vmatpush1.bf16.msra.mxu0 0
        %427 = vmatprep.subr.bf16.mxu0 0
        %428 = vmatpush1.bf16.msra.mxu0 0
        %429 = vmatprep.subr.bf16.mxu0 0
        %430 = vmatpush1.bf16.msra.mxu0 0
        %431 = vmatprep.subr.bf16.mxu0 0
        %432 = vmatpush1.bf16.msra.mxu0 0
        %433 = vmatprep.subr.bf16.mxu0 0
        %434 = vmatpush1.bf16.msra.mxu0 0
        %435 = vmatprep.subr.bf16.mxu0 0
        %436 = vmatpush1.bf16.msra.mxu0 0
        %437 = vmatprep.mubr.bf16.mxu0 0
        %438 = vmatmul.mubr.bf16.gmra.mrb[0].mxu0 %v397
        %v439 = vpop.f32.mrb[0].mxu0
        %v440 = vadd.f32 %v390, %v439
        %v441 = vpop.f32.mrb[0].mxu0
        %v442 = vadd.f32 %v392, %v441
        %v443 = vpop.f32.mrb[0].mxu0
        %v444 = vpop.f32.mrb[0].mxu0
        %445 = vdwg.mxu0
        %s446 = scalar_lea.vmem %s2, 24
        %v447 = vld [vmem:[%s446] sm:$0xf]
        %448 = vrot.lane.b32.xlu0 %v302, 96
        %v449 = vpop.permute.xlu0 %448
        %450 = vrot.lane.b32.xlu0 %v303, 96
        %v451 = vpop.permute.xlu0 %450
        %452 = vrot.lane.b32.xlu0 %v294, 96
        %v453 = vpop.permute.xlu0 %452
        %vm454 = vcmask 785408
        %v455 = vsel %vm454, %v449, %v451
        %v456 = vsel %vm454, %v451, %v453
        %v458 = vsel %vm344, %v447, 0
        %v461 = vsel %vm348, %v455, 0
        %v464 = vsel %vm348, %v456, 0
        %466 = vmatprep.subr.bf16.mxu0 %v464
        %467 = vmatpush1.bf16.msra.mxu0 %v461
        %468 = vmatprep.subr.bf16.mxu0 0
        %469 = vmatpush1.bf16.msra.mxu0 0
        %470 = vmatprep.subr.bf16.mxu0 0
        %471 = vmatpush1.bf16.msra.mxu0 0
        %472 = vmatprep.subr.bf16.mxu0 0
        %473 = vmatpush1.bf16.msra.mxu0 0
        %474 = vmatprep.subr.bf16.mxu0 0
        %475 = vmatpush1.bf16.msra.mxu0 0
        %476 = vmatprep.subr.bf16.mxu0 0
        %477 = vmatpush1.bf16.msra.mxu0 0
        %478 = vmatprep.subr.bf16.mxu0 0
        %479 = vmatpush1.bf16.msra.mxu0 0
        %480 = vmatprep.subr.bf16.mxu0 0
        %481 = vmatpush1.bf16.msra.mxu0 0
        %482 = vmatprep.subr.bf16.mxu0 0
        %483 = vmatpush1.bf16.msra.mxu0 0
        %484 = vmatprep.subr.bf16.mxu0 0
        %485 = vmatpush1.bf16.msra.mxu0 0
        %486 = vmatprep.subr.bf16.mxu0 0
        %487 = vmatpush1.bf16.msra.mxu0 0
        %488 = vmatprep.subr.bf16.mxu0 0
        %489 = vmatpush1.bf16.msra.mxu0 0
        %490 = vmatprep.subr.bf16.mxu0 0
        %491 = vmatpush1.bf16.msra.mxu0 0
        %492 = vmatprep.subr.bf16.mxu0 0
        %493 = vmatpush1.bf16.msra.mxu0 0
        %494 = vmatprep.subr.bf16.mxu0 0
        %495 = vmatpush1.bf16.msra.mxu0 0
        %496 = vmatprep.subr.bf16.mxu0 0
        %497 = vmatpush1.bf16.msra.mxu0 0
        %498 = vmatprep.mubr.bf16.mxu0 0
        %499 = vmatmul.mubr.bf16.gmra.mrb[0].mxu0 %v458
        %v500 = vpop.f32.mrb[0].mxu0
        %v501 = vadd.f32 0.0, %v500
        %v502 = vpop.f32.mrb[0].mxu0
        %v503 = vadd.f32 0.0, %v502
        %v504 = vpop.f32.mrb[0].mxu0
        %v505 = vpop.f32.mrb[0].mxu0
        %506 = vdwg.mxu0
        %v507 = vadd.f32 %v440, %v501
        %v508 = vadd.f32 %v442, %v503
        %vm509 = vcmp.ne.s32.totalorder %v329, 0
        %vm510 = vcmp.ne.s32.totalorder %v330, 0
        %v511 = vsel %vm509, 1, 0
        %v512 = vsel %vm510, 1, 0
        %vm513 = vcmp.eq.s32.totalorder %v511, 1
        %vm514 = vcmp.eq.s32.totalorder %v512, 1
        %v515 = vsel %vm513, %v507, 0.0
        %v516 = vsel %vm514, %v508, 0.0
        %s517 = scalar_lea.vmem %s2, 4
        %v518 = vld [vmem:[%s517] sm:$0xf]
        %s519 = scalar_lea.vmem %s2, 16
        %v520 = vld [vmem:[%s519] sm:$0xf]
        %521 = vrot.lane.b32.xlu0 %v302, 111
        %v522 = vpop.permute.xlu0 %521
        %523 = vrot.lane.b32.xlu0 %v303, 111
        %v524 = vpop.permute.xlu0 %523
        %525 = vrot.lane.b32.xlu0 %v294, 111
        %v526 = vpop.permute.xlu0 %525
        %vm527 = vcmask 908288
        %v528 = vsel %vm527, %v522, %v524
        %v529 = vsel %vm527, %v524, %v526
        %v531 = vsel %vm344, %v520, 0
        %v534 = vsel %vm348, %v528, 0
        %v537 = vsel %vm348, %v529, 0
        %539 = vmatprep.subr.bf16.mxu0 %v537
        %540 = vmatpush1.bf16.msra.mxu0 %v534
        %541 = vmatprep.subr.bf16.mxu0 0
        %542 = vmatpush1.bf16.msra.mxu0 0
        %543 = vmatprep.subr.bf16.mxu0 0
        %544 = vmatpush1.bf16.msra.mxu0 0
        %545 = vmatprep.subr.bf16.mxu0 0
        %546 = vmatpush1.bf16.msra.mxu0 0
        %547 = vmatprep.subr.bf16.mxu0 0
        %548 = vmatpush1.bf16.msra.mxu0 0
        %549 = vmatprep.subr.bf16.mxu0 0
        %550 = vmatpush1.bf16.msra.mxu0 0
        %551 = vmatprep.subr.bf16.mxu0 0
        %552 = vmatpush1.bf16.msra.mxu0 0
        %553 = vmatprep.subr.bf16.mxu0 0
        %554 = vmatpush1.bf16.msra.mxu0 0
        %555 = vmatprep.subr.bf16.mxu0 0
        %556 = vmatpush1.bf16.msra.mxu0 0
        %557 = vmatprep.subr.bf16.mxu0 0
        %558 = vmatpush1.bf16.msra.mxu0 0
        %559 = vmatprep.subr.bf16.mxu0 0
        %560 = vmatpush1.bf16.msra.mxu0 0
        %561 = vmatprep.subr.bf16.mxu0 0
        %562 = vmatpush1.bf16.msra.mxu0 0
        %563 = vmatprep.subr.bf16.mxu0 0
        %564 = vmatpush1.bf16.msra.mxu0 0
        %565 = vmatprep.subr.bf16.mxu0 0
        %566 = vmatpush1.bf16.msra.mxu0 0
        %567 = vmatprep.subr.bf16.mxu0 0
        %568 = vmatpush1.bf16.msra.mxu0 0
        %569 = vmatprep.subr.bf16.mxu0 0
        %570 = vmatpush1.bf16.msra.mxu0 0
        %571 = vmatprep.mubr.bf16.mxu0 0
        %572 = vmatmul.mubr.bf16.gmra.mrb[0].mxu0 %v531
        %v573 = vpop.f32.mrb[0].mxu0
        %v574 = vadd.f32 0.0, %v573
        %v575 = vpop.f32.mrb[0].mxu0
        %v576 = vadd.f32 0.0, %v575
        %v577 = vpop.f32.mrb[0].mxu0
        %v578 = vpop.f32.mrb[0].mxu0
        %579 = vdwg.mxu0
        %580 = vrot.lane.b32.xlu0 %v302, 127
        %v581 = vpop.permute.xlu0 %580
        %582 = vrot.lane.b32.xlu0 %v303, 127
        %v583 = vpop.permute.xlu0 %582
        %584 = vrot.lane.b32.xlu0 %v294, 127
        %v585 = vpop.permute.xlu0 %584
        %vm586 = vcmask 1039360
        %v587 = vsel %vm586, %v581, %v583
        %v588 = vsel %vm586, %v583, %v585
        %v590 = vsel %vm344, %v518, 0
        %v593 = vsel %vm348, %v587, 0
        %v596 = vsel %vm348, %v588, 0
        %598 = vmatprep.subr.bf16.mxu0 %v596
        %599 = vmatpush1.bf16.msra.mxu0 %v593
        %600 = vmatprep.subr.bf16.mxu0 0
        %601 = vmatpush1.bf16.msra.mxu0 0
        %602 = vmatprep.subr.bf16.mxu0 0
        %603 = vmatpush1.bf16.msra.mxu0 0
        %604 = vmatprep.subr.bf16.mxu0 0
        %605 = vmatpush1.bf16.msra.mxu0 0
        %606 = vmatprep.subr.bf16.mxu0 0
        %607 = vmatpush1.bf16.msra.mxu0 0
        %608 = vmatprep.subr.bf16.mxu0 0
        %609 = vmatpush1.bf16.msra.mxu0 0
        %610 = vmatprep.subr.bf16.mxu0 0
        %611 = vmatpush1.bf16.msra.mxu0 0
        %612 = vmatprep.subr.bf16.mxu0 0
        %613 = vmatpush1.bf16.msra.mxu0 0
        %614 = vmatprep.subr.bf16.mxu0 0
        %615 = vmatpush1.bf16.msra.mxu0 0
        %616 = vmatprep.subr.bf16.mxu0 0
        %617 = vmatpush1.bf16.msra.mxu0 0
        %618 = vmatprep.subr.bf16.mxu0 0
        %619 = vmatpush1.bf16.msra.mxu0 0
        %620 = vmatprep.subr.bf16.mxu0 0
        %621 = vmatpush1.bf16.msra.mxu0 0
        %622 = vmatprep.subr.bf16.mxu0 0
        %623 = vmatpush1.bf16.msra.mxu0 0
        %624 = vmatprep.subr.bf16.mxu0 0
        %625 = vmatpush1.bf16.msra.mxu0 0
        %626 = vmatprep.subr.bf16.mxu0 0
        %627 = vmatpush1.bf16.msra.mxu0 0
        %628 = vmatprep.subr.bf16.mxu0 0
        %629 = vmatpush1.bf16.msra.mxu0 0
        %630 = vmatprep.mubr.bf16.mxu0 0
        %631 = vmatmul.mubr.bf16.gmra.mrb[0].mxu0 %v590
        %v632 = vpop.f32.mrb[0].mxu0
        %v633 = vadd.f32 %v574, %v632
        %v634 = vpop.f32.mrb[0].mxu0
        %v635 = vadd.f32 %v576, %v634
        %v636 = vpop.f32.mrb[0].mxu0
        %v637 = vpop.f32.mrb[0].mxu0
        %638 = vdwg.mxu0
        %s639 = scalar_lea.vmem %s2, 28
        %v640 = vld [vmem:[%s639] sm:$0xf]
        %641 = vrot.lane.b32.xlu0 %v302, 95
        %v642 = vpop.permute.xlu0 %641
        %643 = vrot.lane.b32.xlu0 %v303, 95
        %v644 = vpop.permute.xlu0 %643
        %645 = vrot.lane.b32.xlu0 %v294, 95
        %v646 = vpop.permute.xlu0 %645
        %vm647 = vcmask 777216
        %v648 = vsel %vm647, %v642, %v644
        %v649 = vsel %vm647, %v644, %v646
        %v651 = vsel %vm344, %v640, 0
        %v654 = vsel %vm348, %v648, 0
        %v657 = vsel %vm348, %v649, 0
        %659 = vmatprep.subr.bf16.mxu0 %v657
        %660 = vmatpush1.bf16.msra.mxu0 %v654
        %661 = vmatprep.subr.bf16.mxu0 0
        %662 = vmatpush1.bf16.msra.mxu0 0
        %663 = vmatprep.subr.bf16.mxu0 0
        %664 = vmatpush1.bf16.msra.mxu0 0
        %665 = vmatprep.subr.bf16.mxu0 0
        %666 = vmatpush1.bf16.msra.mxu0 0
        %667 = vmatprep.subr.bf16.mxu0 0
        %668 = vmatpush1.bf16.msra.mxu0 0
        %669 = vmatprep.subr.bf16.mxu0 0
        %670 = vmatpush1.bf16.msra.mxu0 0
        %671 = vmatprep.subr.bf16.mxu0 0
        %672 = vmatpush1.bf16.msra.mxu0 0
        %673 = vmatprep.subr.bf16.mxu0 0
        %674 = vmatpush1.bf16.msra.mxu0 0
        %675 = vmatprep.subr.bf16.mxu0 0
        %676 = vmatpush1.bf16.msra.mxu0 0
        %677 = vmatprep.subr.bf16.mxu0 0
        %678 = vmatpush1.bf16.msra.mxu0 0
        %679 = vmatprep.subr.bf16.mxu0 0
        %680 = vmatpush1.bf16.msra.mxu0 0
        %681 = vmatprep.subr.bf16.mxu0 0
        %682 = vmatpush1.bf16.msra.mxu0 0
        %683 = vmatprep.subr.bf16.mxu0 0
        %684 = vmatpush1.bf16.msra.mxu0 0
        %685 = vmatprep.subr.bf16.mxu0 0
        %686 = vmatpush1.bf16.msra.mxu0 0
        %687 = vmatprep.subr.bf16.mxu0 0
        %688 = vmatpush1.bf16.msra.mxu0 0
        %689 = vmatprep.subr.bf16.mxu0 0
        %690 = vmatpush1.bf16.msra.mxu0 0
        %691 = vmatprep.mubr.bf16.mxu0 0
        %692 = vmatmul.mubr.bf16.gmra.mrb[0].mxu0 %v651
        %v693 = vpop.f32.mrb[0].mxu0
        %v694 = vadd.f32 0.0, %v693
        %v695 = vpop.f32.mrb[0].mxu0
        %v696 = vadd.f32 0.0, %v695
        %v697 = vpop.f32.mrb[0].mxu0
        %v698 = vpop.f32.mrb[0].mxu0
        %699 = vdwg.mxu0
        %v700 = vadd.f32 %v633, %v694
        %v701 = vadd.f32 %v635, %v696
        %v702 = vadd.f32 %v515, %v700
        %v703 = vadd.f32 %v516, %v701
        %s704 = scalar_lea.vmem %s2, 8
        %v705 = vld [vmem:[%s704] sm:$0xf]
        %s706 = scalar_lea.vmem %s2, 20
        %v707 = vld [vmem:[%s706] sm:$0xf]
        %708 = vrot.lane.b32.xlu0 %v302, 110
        %v709 = vpop.permute.xlu0 %708
        %710 = vrot.lane.b32.xlu0 %v303, 110
        %v711 = vpop.permute.xlu0 %710
        %712 = vrot.lane.b32.xlu0 %v294, 110
        %v713 = vpop.permute.xlu0 %712
        %vm714 = vcmask 900096
        %v715 = vsel %vm714, %v709, %v711
        %v716 = vsel %vm714, %v711, %v713
        %v718 = vsel %vm344, %v707, 0
        %v721 = vsel %vm348, %v715, 0
        %v724 = vsel %vm348, %v716, 0
        %726 = vmatprep.subr.bf16.mxu0 %v724
        %727 = vmatpush1.bf16.msra.mxu0 %v721
        %728 = vmatprep.subr.bf16.mxu0 0
        %729 = vmatpush1.bf16.msra.mxu0 0
        %730 = vmatprep.subr.bf16.mxu0 0
        %731 = vmatpush1.bf16.msra.mxu0 0
        %732 = vmatprep.subr.bf16.mxu0 0
        %733 = vmatpush1.bf16.msra.mxu0 0
        %734 = vmatprep.subr.bf16.mxu0 0
        %735 = vmatpush1.bf16.msra.mxu0 0
        %736 = vmatprep.subr.bf16.mxu0 0
        %737 = vmatpush1.bf16.msra.mxu0 0
        %738 = vmatprep.subr.bf16.mxu0 0
        %739 = vmatpush1.bf16.msra.mxu0 0
        %740 = vmatprep.subr.bf16.mxu0 0
        %741 = vmatpush1.bf16.msra.mxu0 0
        %742 = vmatprep.subr.bf16.mxu0 0
        %743 = vmatpush1.bf16.msra.mxu0 0
        %744 = vmatprep.subr.bf16.mxu0 0
        %745 = vmatpush1.bf16.msra.mxu0 0
        %746 = vmatprep.subr.bf16.mxu0 0
        %747 = vmatpush1.bf16.msra.mxu0 0
        %748 = vmatprep.subr.bf16.mxu0 0
        %749 = vmatpush1.bf16.msra.mxu0 0
        %750 = vmatprep.subr.bf16.mxu0 0
        %751 = vmatpush1.bf16.msra.mxu0 0
        %752 = vmatprep.subr.bf16.mxu0 0
        %753 = vmatpush1.bf16.msra.mxu0 0
        %754 = vmatprep.subr.bf16.mxu0 0
        %755 = vmatpush1.bf16.msra.mxu0 0
        %756 = vmatprep.subr.bf16.mxu0 0
        %757 = vmatpush1.bf16.msra.mxu0 0
        %758 = vmatprep.mubr.bf16.mxu0 0
        %759 = vmatmul.mubr.bf16.gmra.mrb[0].mxu0 %v718
        %v760 = vpop.f32.mrb[0].mxu0
        %v761 = vadd.f32 0.0, %v760
        %v762 = vpop.f32.mrb[0].mxu0
        %v763 = vadd.f32 0.0, %v762
        %v764 = vpop.f32.mrb[0].mxu0
        %v765 = vpop.f32.mrb[0].mxu0
        %766 = vdwg.mxu0
        %767 = vrot.lane.b32.xlu0 %v302, 126
        %v768 = vpop.permute.xlu0 %767
        %769 = vrot.lane.b32.xlu0 %v303, 126
        %v770 = vpop.permute.xlu0 %769
        %771 = vrot.lane.b32.xlu0 %v294, 126
        %v772 = vpop.permute.xlu0 %771
        %vm773 = vcmask 1031168
        %v774 = vsel %vm773, %v768, %v770
        %v775 = vsel %vm773, %v770, %v772
        %v777 = vsel %vm344, %v705, 0
        %v780 = vsel %vm348, %v774, 0
        %v783 = vsel %vm348, %v775, 0
        %785 = vmatprep.subr.bf16.mxu0 %v783
        %786 = vmatpush1.bf16.msra.mxu0 %v780
        %787 = vmatprep.subr.bf16.mxu0 0
        %788 = vmatpush1.bf16.msra.mxu0 0
        %789 = vmatprep.subr.bf16.mxu0 0
        %790 = vmatpush1.bf16.msra.mxu0 0
        %791 = vmatprep.subr.bf16.mxu0 0
        %792 = vmatpush1.bf16.msra.mxu0 0
        %793 = vmatprep.subr.bf16.mxu0 0
        %794 = vmatpush1.bf16.msra.mxu0 0
        %795 = vmatprep.subr.bf16.mxu0 0
        %796 = vmatpush1.bf16.msra.mxu0 0
        %797 = vmatprep.subr.bf16.mxu0 0
        %798 = vmatpush1.bf16.msra.mxu0 0
        %799 = vmatprep.subr.bf16.mxu0 0
        %800 = vmatpush1.bf16.msra.mxu0 0
        %801 = vmatprep.subr.bf16.mxu0 0
        %802 = vmatpush1.bf16.msra.mxu0 0
        %803 = vmatprep.subr.bf16.mxu0 0
        %804 = vmatpush1.bf16.msra.mxu0 0
        %805 = vmatprep.subr.bf16.mxu0 0
        %806 = vmatpush1.bf16.msra.mxu0 0
        %807 = vmatprep.subr.bf16.mxu0 0
        %808 = vmatpush1.bf16.msra.mxu0 0
        %809 = vmatprep.subr.bf16.mxu0 0
        %810 = vmatpush1.bf16.msra.mxu0 0
        %811 = vmatprep.subr.bf16.mxu0 0
        %812 = vmatpush1.bf16.msra.mxu0 0
        %813 = vmatprep.subr.bf16.mxu0 0
        %814 = vmatpush1.bf16.msra.mxu0 0
        %815 = vmatprep.subr.bf16.mxu0 0
        %816 = vmatpush1.bf16.msra.mxu0 0
        %817 = vmatprep.mubr.bf16.mxu0 0
        %818 = vmatmul.mubr.bf16.gmra.mrb[0].mxu0 %v777
        %v819 = vpop.f32.mrb[0].mxu0
        %v820 = vadd.f32 %v761, %v819
        %v821 = vpop.f32.mrb[0].mxu0
        %v822 = vadd.f32 %v763, %v821
        %v823 = vpop.f32.mrb[0].mxu0
        %v824 = vpop.f32.mrb[0].mxu0
        %825 = vdwg.mxu0
        %s826 = scalar_lea.vmem %s2, 32
        %v827 = vld [vmem:[%s826] sm:$0xf]
        %828 = vrot.lane.b32.xlu0 %v302, 94
        %v829 = vpop.permute.xlu0 %828
        %830 = vrot.lane.b32.xlu0 %v303, 94
        %v831 = vpop.permute.xlu0 %830
        %832 = vrot.lane.b32.xlu0 %v294, 94
        %v833 = vpop.permute.xlu0 %832
        %vm834 = vcmask 769024
        %v835 = vsel %vm834, %v829, %v831
        %v836 = vsel %vm834, %v831, %v833
        %v838 = vsel %vm344, %v827, 0
        %v841 = vsel %vm348, %v835, 0
        %v844 = vsel %vm348, %v836, 0
        %846 = vmatprep.subr.bf16.mxu0 %v844
        %847 = vmatpush1.bf16.msra.mxu0 %v841
        %848 = vmatprep.subr.bf16.mxu0 0
        %849 = vmatpush1.bf16.msra.mxu0 0
        %850 = vmatprep.subr.bf16.mxu0 0
        %851 = vmatpush1.bf16.msra.mxu0 0
        %852 = vmatprep.subr.bf16.mxu0 0
        %853 = vmatpush1.bf16.msra.mxu0 0
        %854 = vmatprep.subr.bf16.mxu0 0
        %855 = vmatpush1.bf16.msra.mxu0 0
        %856 = vmatprep.subr.bf16.mxu0 0
        %857 = vmatpush1.bf16.msra.mxu0 0
        %858 = vmatprep.subr.bf16.mxu0 0
        %859 = vmatpush1.bf16.msra.mxu0 0
        %860 = vmatprep.subr.bf16.mxu0 0
        %861 = vmatpush1.bf16.msra.mxu0 0
        %862 = vmatprep.subr.bf16.mxu0 0
        %863 = vmatpush1.bf16.msra.mxu0 0
        %864 = vmatprep.subr.bf16.mxu0 0
        %865 = vmatpush1.bf16.msra.mxu0 0
        %866 = vmatprep.subr.bf16.mxu0 0
        %867 = vmatpush1.bf16.msra.mxu0 0
        %868 = vmatprep.subr.bf16.mxu0 0
        %869 = vmatpush1.bf16.msra.mxu0 0
        %870 = vmatprep.subr.bf16.mxu0 0
        %871 = vmatpush1.bf16.msra.mxu0 0
        %872 = vmatprep.subr.bf16.mxu0 0
        %873 = vmatpush1.bf16.msra.mxu0 0
        %874 = vmatprep.subr.bf16.mxu0 0
        %875 = vmatpush1.bf16.msra.mxu0 0
        %876 = vmatprep.subr.bf16.mxu0 0
        %877 = vmatpush1.bf16.msra.mxu0 0
        %878 = vmatprep.mubr.bf16.mxu0 0
        %879 = vmatmul.mubr.bf16.gmra.mrb[0].mxu0 %v838
        %v880 = vpop.f32.mrb[0].mxu0
        %v881 = vadd.f32 0.0, %v880
        %v882 = vpop.f32.mrb[0].mxu0
        %v883 = vadd.f32 0.0, %v882
        %v884 = vpop.f32.mrb[0].mxu0
        %v885 = vpop.f32.mrb[0].mxu0
        %886 = vdwg.mxu0
        %v887 = vadd.f32 %v820, %v881
        %v888 = vadd.f32 %v822, %v883
        %vm889 = vcmp.ne.s32.totalorder %v329, 15
        %vm890 = vcmp.ne.s32.totalorder %v330, 15
        %v891 = vsel %vm889, 1, 0
        %v892 = vsel %vm890, 1, 0
        %vm893 = vcmp.eq.s32.totalorder %v891, 1
        %vm894 = vcmp.eq.s32.totalorder %v892, 1
        %v895 = vsel %vm893, %v887, 0.0
        %v896 = vsel %vm894, %v888, 0.0
        %v897 = vadd.f32 %v702, %v895
        %v898 = vadd.f32 %v703, %v896
        %v899 = vld [vmem:[%s3] sm:$0xff]
        %901 = vset.pattern.permute.xlu0 0
        %902 = vperm.xlu0 %901, %v899
        %v903 = vpop.permute.xlu0 %902
        %v905 = vadd.f32 %v897, %v903
        %v906 = vadd.f32 %v898, %v903
        %v907 = vmax.f32 %v905, 0.0
        %v908 = vmax.f32 %v906, 0.0
        %909 = vst [vmem:[%s260] sm:$0xff] %v907
        %910 = vst [vmem:[%s260 + $0x8] sm:$0xff] %v908
        %s911 = sand.u32 %s142, 1
        %s912 = scalar_lea.sflag [#allocation3], %s911
        %s913 = sand.u32 %s142, 1
        %s914 = smul.addr %s913, 16
        %s915 = scalar_lea.vmem [#allocation2], %s914
        // Predicated region
        $region37: #{tpu_custom_call.1} parent=35 // pred_check
          %p916 = pneg %p152
        $region38: #{tpu_custom_call.1} parent=35 // pred_check_branch
          %918 = sbr.rel (%p916) target = $region40
        $region39: #{tpu_custom_call.1} parent=35 // pred_region
          %s919 = smul.u32 2, %s23
          %s921 = ssub.s32 256, 256
          %922 = vsyncadd %s912, %s921
          %s923 = smul.addr %s22, 2
          %s924 = sadd.s32 %s919, %s923
          %s925 = smul.addr %s924, 128
          %s926 = scalar_lea.hbm %s4, %s925
          %s928 = sshll.u32 %s915, 4
          %s929 = int_to_ptr.vmem [resolvable:$true] %s928
          %931 = dma.vmem_to_hbm [thread:$0]  %s929, 256, %s926, %s912
        $region40: #{tpu_custom_call.1} parent=35 // pred_fallthru
          _
      $region36: #{tpu_custom_call.1} parent=5 // pred_fallthru
        _
      %p932 = scmp.le.s32.totalorder 2, %s13
      // Predicated region
      $region41: #{tpu_custom_call.1} parent=5 // pred_check
        %p933 = pneg %p932
      $region42: #{tpu_custom_call.1} parent=5 // pred_check_branch
        %935 = sbr.rel (%p933) target = $region44
      $region43: #{tpu_custom_call.1} parent=5 // pred_region
        %s936 = ssub.s32 %s13, 2
        // Predicated region
        $region45: #{tpu_custom_call.1} parent=43 // pred_check
          %p937 = pneg %p158
        $region46: #{tpu_custom_call.1} parent=43 // pred_check_branch
          %939 = sbr.rel (%p937) target = $region48
        $region47: #{tpu_custom_call.1} parent=43 // pred_region
          %s940 = sand.u32 %s143, 1
          %s941 = scalar_lea.sflag [#allocation3], %s940
          %s942 = sand.u32 %s143, 1
          %s943 = smul.addr %s942, 16
          %s944 = scalar_lea.vmem [#allocation2], %s943
          %945 = dma.done %s941, 256
        $region48: #{tpu_custom_call.1} parent=43 // pred_fallthru
          _
      $region44: #{tpu_custom_call.1} parent=5 // pred_fallthru
        _
    $region6: #{tpu_custom_call.1} parent=1 // loop_footer
      %s17 = sadd.s32 1, %s13
    $region7: #{tpu_custom_call.1} parent=1 // loop_footer_branch
      %12 = sbr.rel target = $region3
    $region8: #{tpu_custom_call.1} parent=1 // loop_exit
      _
    %946 = vsyncpa [#allocation3], 1
    %s947 = scalar_lea.sflag [#allocation3], 1
    %948 = vsyncpa %s947, 1

</llo_original>
